<compile_context>
chip_gen: v6e
topology: v6e:2x2x1
jax: 0.10.0
libtpu: 0.0.40
codegen_flags: <defaults>
</compile_context>

<pallas_src>
import functools

import jax
import jax.numpy as jnp
from jax.experimental import pallas as pl
from jax.experimental.pallas import tpu as pltpu


def _relux_kernel(x_ref, o_ref, *, thre):
    x = x_ref[...]
    o_ref[...] = jnp.clip(x, jnp.zeros((), x.dtype), jnp.asarray(thre, x.dtype))


def _round_up(a, b):
    return -(-a // b) * b


def _sublane_multiple(dtype):
    # f32 -> 8 rows per vreg; bf16/f16 -> 16; int8/fp8 -> 32 (sublane packing).
    itemsize = jnp.dtype(dtype).itemsize
    if itemsize >= 4:
        return 8
    if itemsize == 2:
        return 16
    return 32


def _per_chip_budget():
    """Returns (target block bytes, vmem_limit_bytes or None) per TPU generation."""
    kind = ""
    try:
        kind = jax.devices()[0].device_kind.lower()
    except Exception:
        pass
    if "v6" in kind:
        # v6e: 128 MiB physical VMEM -> 8 MiB blocks; raise scoped limit so
        # 2 double-buffers x (in + out) x 8 MiB = 32 MiB fits comfortably.
        return 8 << 20, 64 << 20
    if "v5 lite" in kind or "v5e" in kind or "v5lite" in kind:
        # v5e: ~0.82 TB/s HBM; 2 MiB blocks already sit on the roofline plateau
        # and 2x(in+out)x2 MiB = 8 MiB fits the 16 MiB default scoped VMEM.
        return 2 << 20, None
    if "7" in kind:
        # v7x: only 64 MiB physical VMEM; keep 2x(in+out)x6 MiB = 24 MiB within
        # the default 32 MiB scoped limit (do NOT raise to v6e-style values).
        return 6 << 20, None
    # Unknown generation: conservative; 2x(in+out)x4 MiB = 16 MiB.
    return 4 << 20, None


def relux(x, thre=8, *, cols=1024):
    """Elementwise clamp(x, 0, thre) via a lane-dense, bandwidth-tuned Pallas kernel."""
    orig_shape = x.shape
    orig_dtype = x.dtype

    flat = x.reshape(-1)
    n = flat.shape[0]
    if n == 0:
        return x

    itemsize = jnp.dtype(orig_dtype).itemsize
    sub = _sublane_multiple(orig_dtype)

    # Wide, lane-dense slab: large multiple of 128 lanes -> unmasked stores,
    # few grid steps (per-step pipeline overhead ~0.35us amortized away).
    cols = max(128, (cols // 128) * 128)
    rows = -(-n // cols)
    rows_pad = _round_up(rows, sub)

    # Per-generation block budget (multi-MiB blocks for an HBM-bound kernel).
    block_budget, vmem_limit = _per_chip_budget()
    br_budget = max(sub, ((block_budget // (cols * itemsize)) // sub) * sub)

    num_blocks = -(-rows_pad // br_budget)
    # >=2 grid steps on non-trivial inputs so v7x megacore can shard the axis.
    if num_blocks == 1 and rows_pad >= 2 * sub and rows_pad * cols * itemsize > (512 << 10):
        num_blocks = 2
    # Balance rows evenly across blocks -> minimal padding, evenly dividing grid.
    br = _round_up(-(-rows_pad // num_blocks), sub)
    rows_full = num_blocks * br
    total = rows_full * cols

    # Single pad; skipped entirely when already aligned (reshape is free, pad is a copy).
    if total != n:
        flat = jnp.pad(flat, (0, total - n))
    slab = flat.reshape(rows_full, cols)

    compiler_params = pltpu.CompilerParams(
        dimension_semantics=("parallel",),
        **({"vmem_limit_bytes": vmem_limit} if vmem_limit is not None else {}),
    )

    out = pl.pallas_call(
        functools.partial(_relux_kernel, thre=thre),
        out_shape=jax.ShapeDtypeStruct((rows_full, cols), orig_dtype),
        grid_spec=pltpu.PrefetchScalarGridSpec(
            num_scalar_prefetch=0,
            grid=(num_blocks,),
            in_specs=[pl.BlockSpec((br, cols), lambda i: (i, 0))],
            out_specs=pl.BlockSpec((br, cols), lambda i: (i, 0)),
        ),
        compiler_params=compiler_params,
        cost_estimate=pl.CostEstimate(
            flops=2 * total,
            transcendentals=0,
            bytes_accessed=2 * total * itemsize,
        ),
    )(slab)

    return out.reshape(-1)[:n].reshape(orig_shape)


if __name__ == "__main__":
    key = jax.random.PRNGKey(0)
    k0, k1 = jax.random.split(key)
    thre = 8

    # NCHW input as implied by the PyTorch module; scale so values cross 0 and thre.
    x = jax.random.normal(k0, (2, 4, 16, 16), dtype=jnp.float32) * 6.0
    y = jax.block_until_ready(relux(x, thre=thre))
    ref = jnp.clip(x, 0.0, float(thre))
    assert y.shape == x.shape and y.dtype == x.dtype
    assert jnp.allclose(y, ref), "mismatch vs reference clamp"

    # Odd-sized input exercises the single-pad path.
    x2 = jax.random.normal(k1, (3, 5, 7, 11), dtype=jnp.float32) * 6.0
    y2 = jax.block_until_ready(relux(x2, thre=thre))
    assert jnp.allclose(y2, jnp.clip(x2, 0.0, float(thre))), "mismatch (padded path)"

    print("KERNEL_OK")
</pallas_src>

<mosaic_0001>
module attributes {stable_mosaic.version = 11 : i64} {
  func.func @_relux_kernel(%arg0: i32, %arg1: memref<8x1024xf32, #tpu.memory_space<vmem>>, %arg2: memref<8x1024xf32, #tpu.memory_space<vmem>>) attributes {dimension_semantics = [#tpu.dimension_semantics<parallel>], iteration_bounds = array<i64: 1>, scalar_prefetch = 0 : i64, scratch_operands = 0 : i64, tpu.core_type = #tpu.core_type<tc>, window_params = [{transform_indices = @transform_0, window_bounds = array<i64: 8, 1024>}, {transform_indices = @transform_1, window_bounds = array<i64: 8, 1024>}]} {
    %c0 = arith.constant 0 : index
    %c0_0 = arith.constant 0 : index
    %0 = vector.load %arg1[%c0, %c0_0] : memref<8x1024xf32, #tpu.memory_space<vmem>>, vector<8x1024xf32>
    %cst = arith.constant 0.000000e+00 : f32
    %cst_1 = arith.constant 8.000000e+00 : f32
    %1 = vector.broadcast %cst : f32 to vector<8x1024xf32>
    %2 = arith.maximumf %1, %0 : vector<8x1024xf32>
    %3 = vector.broadcast %cst_1 : f32 to vector<8x1024xf32>
    %4 = arith.minimumf %3, %2 : vector<8x1024xf32>
    %c0_2 = arith.constant 0 : index
    %c0_3 = arith.constant 0 : index
    %5 = vector.load %arg2[%c0_2, %c0_3] : memref<8x1024xf32, #tpu.memory_space<vmem>>, vector<8x1024xf32>
    tpu.vector_store %arg2[%c0_2, %c0_3], %4 {strides = array<i32>} : memref<8x1024xf32, #tpu.memory_space<vmem>>, vector<8x1024xf32>,
    return
  }
  func.func @transform_0(%arg0: i32) -> (i32, i32) {
    %c0_i32 = arith.constant 0 : i32
    %c0_i32_0 = arith.constant 0 : i32
    return %arg0, %c0_i32 : i32, i32
  }
  func.func @transform_1(%arg0: i32) -> (i32, i32) {
    %c0_i32 = arith.constant 0 : i32
    %c0_i32_0 = arith.constant 0 : i32
    return %arg0, %c0_i32 : i32, i32
  }
}

</mosaic_0001>

<llo_original>
// kernel: tpu_custom_call.1
$region0: #{tpu_custom_call.1}
  #allocation0 [shape = 'u32[]', space=smem, size = 0x4, offset = 0x4, fixed_abs, tag = 'smem constant byte address 0x4 - core index']
  #allocation1 [shape = 'u32[144,128]{1,0:T(1,128)}', space=vmem, size = 0x12000, scoped, tag = 'internal scratch']
  %s0 = inlined_call_operand.hbm [shape: f32[8,1024], index: 0, kind: input, shape index: {}]
  %s1 = inlined_call_operand.hbm [shape: f32[8,1024], index: 1, kind: output, shape index: {}]
  %s2 = sld [smem:[#allocation0]]
  $region18: #{tpu_custom_call.1} parent=0
    _
  %s4 = ssub.s32 1, %s2
  %s5 = scalar_select 0, %s4, %s2
  $region1: #{tpu_custom_call.1} parent=0
    #allocation2 [shape = 'u8[32768]{0}', space=vmem, size = 0x8000, scoped, tag = 'input window, operand 0, single buffered']
    #allocation3 [shape = 's32[1]{0}', space=sflag, size = 0x4, scoped, tag = 'scoped memory for tpu_custom_call.1']
    #allocation4 [shape = 's32[1]{0}', space=sflag, size = 0x4, scoped, tag = 'scoped memory for tpu_custom_call.1']
    #allocation5 [shape = 'u8[32768]{0}', space=vmem, size = 0x8000, scoped, tag = 'output window, operand 0, single buffered']
    %6 = vsyncpa [#allocation3], 0
    %7 = vsyncpa [#allocation4], 0
    // Predicated region
    $region2: #{tpu_custom_call.1} parent=1 // pred_check
      _
    $region3: #{tpu_custom_call.1} parent=1 // pred_check_branch
      %9 = sbr.rel (0) target = $region5
    $region4: #{tpu_custom_call.1} parent=1 // pred_region
      %s11 = ssub.s32 1024, 1024
      %12 = vsyncadd [#allocation3], %s11
      %s14 = sshll.u32 [#allocation2], 4
      %s15 = int_to_ptr.vmem [resolvable:$true] %s14
      %17 = dma.hbm_to_vmem [thread:$0]  %s0, 1024, %s15, [#allocation3]
    $region5: #{tpu_custom_call.1} parent=1 // pred_fallthru
      _
    // Predicated region
    $region6: #{tpu_custom_call.1} parent=1 // pred_check
      _
    $region7: #{tpu_custom_call.1} parent=1 // pred_check_branch
      %19 = sbr.rel (0) target = $region9
    $region8: #{tpu_custom_call.1} parent=1 // pred_region
      %20 = dma.done [#allocation3], 1024
    $region9: #{tpu_custom_call.1} parent=1 // pred_fallthru
      _
    %v21 = vld [vmem:[#allocation2] sm:$0xff]
    %v22 = vld [vmem:[#allocation2 + $0x8] sm:$0xff]
    %v23 = vld [vmem:[#allocation2 + $0x10] sm:$0xff]
    %v24 = vld [vmem:[#allocation2 + $0x18] sm:$0xff]
    %v25 = vld [vmem:[#allocation2 + $0x20] sm:$0xff]
    %v26 = vld [vmem:[#allocation2 + $0x28] sm:$0xff]
    %v27 = vld [vmem:[#allocation2 + $0x30] sm:$0xff]
    %v28 = vld [vmem:[#allocation2 + $0x38] sm:$0xff]
    %v29 = vmax.f32 %v21, 0.0
    %v30 = vmax.f32 %v22, 0.0
    %v31 = vmax.f32 %v23, 0.0
    %v32 = vmax.f32 %v24, 0.0
    %v33 = vmax.f32 %v25, 0.0
    %v34 = vmax.f32 %v26, 0.0
    %v35 = vmax.f32 %v27, 0.0
    %v36 = vmax.f32 %v28, 0.0
    %v37 = vmin.f32 %v29, 8.0
    %v38 = vmin.f32 %v30, 8.0
    %v39 = vmin.f32 %v31, 8.0
    %v40 = vmin.f32 %v32, 8.0
    %v41 = vmin.f32 %v33, 8.0
    %v42 = vmin.f32 %v34, 8.0
    %v43 = vmin.f32 %v35, 8.0
    %v44 = vmin.f32 %v36, 8.0
    %45 = vst [vmem:[#allocation5] sm:$0xff] %v37
    %46 = vst [vmem:[#allocation5 + $0x8] sm:$0xff] %v38
    %47 = vst [vmem:[#allocation5 + $0x10] sm:$0xff] %v39
    %48 = vst [vmem:[#allocation5 + $0x18] sm:$0xff] %v40
    %49 = vst [vmem:[#allocation5 + $0x20] sm:$0xff] %v41
    %50 = vst [vmem:[#allocation5 + $0x28] sm:$0xff] %v42
    %51 = vst [vmem:[#allocation5 + $0x30] sm:$0xff] %v43
    %52 = vst [vmem:[#allocation5 + $0x38] sm:$0xff] %v44
    // Predicated region
    $region10: #{tpu_custom_call.1} parent=1 // pred_check
      _
    $region11: #{tpu_custom_call.1} parent=1 // pred_check_branch
      %54 = sbr.rel (0) target = $region13
    $region12: #{tpu_custom_call.1} parent=1 // pred_region
      %s56 = ssub.s32 1024, 1024
      %57 = vsyncadd [#allocation4], %s56
      %s59 = sshll.u32 [#allocation5], 4
      %s60 = int_to_ptr.vmem [resolvable:$true] %s59
      %62 = dma.vmem_to_hbm [thread:$0]  %s60, 1024, %s1, [#allocation4]
    $region13: #{tpu_custom_call.1} parent=1 // pred_fallthru
      _
    // Predicated region
    $region14: #{tpu_custom_call.1} parent=1 // pred_check
      _
    $region15: #{tpu_custom_call.1} parent=1 // pred_check_branch
      %64 = sbr.rel (0) target = $region17
    $region16: #{tpu_custom_call.1} parent=1 // pred_region
      %65 = dma.done [#allocation4], 1024
    $region17: #{tpu_custom_call.1} parent=1 // pred_fallthru
      _
    %66 = vsyncpa [#allocation3], 1
    %67 = vsyncpa [#allocation4], 1

</llo_original>
